<compile_context>
chip_gen: v5e
topology: v5e:2x2
jax: 0.10.0
libtpu: 0.0.40
codegen_flags: <defaults>
</compile_context>

<pallas_src>
import functools

import jax
import jax.numpy as jnp
from jax.experimental import pallas as pl
from jax.experimental.pallas import tpu as pltpu


def _round_up(n, m):
    return ((n + m - 1) // m) * m


def _select_gate_dtype():
    # bf16 EUP/VPU exists on v6e/v7x; v5e and older lack it (bf16 there only adds cast traffic).
    kind = jax.devices()[0].device_kind.lower()
    return jnp.bfloat16 if ("v6" in kind or "v7" in kind) else jnp.float32


def lstm_model_kernel(x_ref, wlin_ref, wih_ref, bias_ref, small_ref, out_ref, *,
                      num_layers, hidden_size, gate_dtype):
    H = hidden_size

    # --- self.linear(x.unsqueeze(1)): (tb, I) @ (I, H) + b ---------------------
    # bf16 MXU operands, f32 accumulation; downstream elementwise math is f32.
    h = jnp.dot(x_ref[...].astype(jnp.bfloat16), wlin_ref[...],
                preferred_element_type=jnp.float32) + small_ref[0:1, :]

    # --- self.lstm(x, (h0, c0)) with seq_len == 1 and zero state ---------------
    # PyTorch gate order i, f, g, o; c_prev == 0 -> c = i*g, h = o*tanh(c).  The forget gate and
    # W_hh were stripped in init_params (valid only because seq_len == 1 and h0 == c0 == 0).
    # One fused (tb, H) @ (H, 3H) matmul per layer against a packed [i | g | o] RHS.
    # NOTE: static Python unroll is fine for small L; for L > ~4 switch to lax.fori_loop with
    # dynamic wih_ref[l] indexing to bound vreg live ranges.
    for l in range(num_layers):
        z = jnp.dot(h.astype(jnp.bfloat16), wih_ref[l],
                    preferred_element_type=jnp.float32) + bias_ref[l]          # (tb, 3H) f32
        zg = z.astype(gate_dtype)                # bf16 EUP on v6e/v7x, f32 on v5e
        i_g = jax.nn.sigmoid(zg[:, 0:H])
        g_g = jnp.tanh(zg[:, H:2 * H])
        o_g = jax.nn.sigmoid(zg[:, 2 * H:3 * H])
        h = (o_g * jnp.tanh(i_g * g_g)).astype(jnp.float32)

    # --- self.ln(out[:, -1, :])  (eps=1e-5, biased variance) -------------------
    # var = E[h^2] - E[h]^2: the two XLU reductions are independent; clamp for safety.
    mean = jnp.mean(h, axis=-1, keepdims=True)
    msq = jnp.mean(h * h, axis=-1, keepdims=True)
    var = jnp.maximum(msq - mean * mean, 0.0)
    hn = (h - mean) * jax.lax.rsqrt(var + 1e-5) * small_ref[1:2, :] + small_ref[2:3, :]

    # --- self.dropout(out): identity at inference -------------------------------
    # TODO(synk): training-mode dropout (pltpu.prng_seed + random mask + 1/(1-p) scale).

    # --- self.activation(out): ReLU ---------------------------------------------
    hn = jnp.maximum(hn, 0.0)

    # --- self.fc(out): (tb, H) @ (H, 1) + b as VPU multiply + lane reduction ----
    # (tb, 1) store: only 4 B/row of HBM writeback.
    out_ref[...] = (jnp.sum(hn * small_ref[3:4, :], axis=-1, keepdims=True)
                    + small_ref[4:5, 0:1])


def lstm_model_forward(x, params, *, tile_batch=4096, gate_dtype=None):
    """x: (B, input_size) float32. Returns (B, 1) float32 (LSTMModel.forward, eval mode, ReLU)."""
    wlin_T, wih_p, bias_p, small = params
    assert x.ndim == 2, "kernel assumes the module's forward: seq_len == 1 and zero (h0, c0)"
    B, I = x.shape
    L, H, H3 = wih_p.shape
    assert H3 == 3 * H and wlin_T.shape == (I, H)
    if gate_dtype is None:
        gate_dtype = _select_gate_dtype()

    # Resident-weight ceiling: all gate weights stay in VMEM across the whole grid.  Must fit
    # comfortably under v7x's 64 MiB physical VMEM (vs 128 MiB on v5e/v6e).
    resident_bytes = wih_p.size * wih_p.dtype.itemsize + wlin_T.size * wlin_T.dtype.itemsize
    if resident_bytes > 24 * 1024 * 1024:
        # TODO(synk): switch wih_p to memory_space=pl.ANY and stream per-layer gate weights with
        # an inner pltpu.emit_pipeline once the weight stack outgrows VMEM residency.
        raise NotImplementedError("LSTM weight stack too large for the VMEM-resident layout")

    # Batch tile: big enough to amortize the ~0.35 us per-grid-step cost, multiple of 8, never
    # bigger than the (8-rounded) batch.  Force >= 2 grid steps when the batch allows it so the
    # "parallel" axis can split across v7x's two TensorCores (no-op on v5e/v6e).
    b_req = _round_up(B, 8)
    tb = min(tile_batch, b_req)
    if b_req // tb < 2 and b_req >= 16:
        tb = _round_up((b_req + 1) // 2, 8)
    b_pad = _round_up(B, tb)
    if b_pad != B:
        # Pad rows are row-local through every op, so they cannot contaminate real rows.
        x = jnp.pad(x, ((0, b_pad - B), (0, 0)))
    num_tiles = b_pad // tb

    kernel = functools.partial(lstm_model_kernel, num_layers=L, hidden_size=H,
                               gate_dtype=gate_dtype)
    out = pl.pallas_call(
        kernel,
        out_shape=jax.ShapeDtypeStruct((b_pad, 1), jnp.float32),
        grid_spec=pltpu.PrefetchScalarGridSpec(
            num_scalar_prefetch=0,
            grid=(num_tiles,),
            in_specs=[
                pl.BlockSpec((tb, I), lambda i: (i, 0)),            # x: tiled over batch
                pl.BlockSpec((I, H), lambda i: (0, 0)),             # wlin_T (bf16), VMEM-resident
                pl.BlockSpec((L, H, 3 * H), lambda i: (0, 0, 0)),   # packed [i|g|o] gate weights
                pl.BlockSpec((L, 1, 3 * H), lambda i: (0, 0, 0)),   # packed gate biases
                pl.BlockSpec((8, H), lambda i: (0, 0)),             # [blin, gamma, beta, wfc, bfc]
            ],
            out_specs=pl.BlockSpec((tb, 1), lambda i: (i, 0)),      # 4 B/row HBM writeback
        ),
        compiler_params=pltpu.CompilerParams(
            dimension_semantics=("parallel",),       # shards batch tiles across TCs on v7x
            vmem_limit_bytes=32 * 1024 * 1024,
        ),
    )(x, wlin_T, wih_p, bias_p, small)
    return out[:B]


def init_params(key, input_size, hidden_size, num_layers):
    """Deterministic synthetic parameters (PyTorch-like uniform init), pre-packed for the kernel."""
    H, I, L = hidden_size, input_size, num_layers
    keys = jax.random.split(key, 7)

    def u(k, shape, fan_in):
        bound = 1.0 / jnp.sqrt(fan_in)
        return jax.random.uniform(k, shape, jnp.float32, -bound, bound)

    # nn.Linear(input_size, hidden_size)
    w_lin = u(keys[0], (H, I), I)
    b_lin = u(keys[1], (H,), I)

    # nn.LSTM: per-layer weight_ih (4H, H) (layer-0 input is already H-dim after self.linear),
    # bias_ih/bias_hh (4H,).  weight_hh and the forget gate are dead for this forward
    # (seq_len == 1, zero (h0, c0)) and never materialized for the kernel.
    w_ih = u(keys[2], (L, 4 * H, H), H)
    b_ih = u(keys[3], (L, 4 * H), H)
    b_hh = u(keys[4], (L, 4 * H), H)

    # nn.LayerNorm(hidden_size)
    gamma = jnp.ones((H,), jnp.float32)
    beta = jnp.zeros((H,), jnp.float32)

    # nn.Linear(hidden_size, 1)
    w_fc = u(keys[5], (H,), H)
    b_fc = u(keys[6], (), H)

    # --- pack for the kernel ----------------------------------------------------
    # Fused per-layer gate RHS: columns [ W_i^T | W_g^T | W_o^T ] -> (L, H, 3H) bf16 MXU operand.
    gate_rows = (slice(0, H), slice(2 * H, 3 * H), slice(3 * H, 4 * H))   # PyTorch order i, g, o
    wih_p = jnp.stack(
        [jnp.concatenate([jnp.transpose(w_ih[l, r]) for r in gate_rows], axis=1)
         for l in range(L)], axis=0).astype(jnp.bfloat16)                 # (L, H, 3H)
    b_sum = b_ih + b_hh
    bias_p = jnp.stack(
        [jnp.concatenate([b_sum[l, r] for r in gate_rows], axis=0)[None, :]
         for l in range(L)], axis=0)                                      # (L, 1, 3H) f32

    wlin_T = jnp.transpose(w_lin).astype(jnp.bfloat16)                    # (I, H) bf16

    # Small resident operands packed into one (8, H) f32 block:
    #   row 0 = linear bias, 1 = LN gamma, 2 = LN beta, 3 = fc weight row, 4 = fc bias (bcast).
    small = jnp.zeros((8, H), jnp.float32)
    small = small.at[0].set(b_lin).at[1].set(gamma).at[2].set(beta)
    small = small.at[3].set(w_fc).at[4].set(jnp.full((H,), b_fc))

    return (wlin_T, wih_p, bias_p, small)


def reference_forward(x, params, *, gate_dtype=jnp.float32):
    """Pure-JAX reference mirroring the PyTorch forward (eval mode) with the kernel's numerics
    (bf16 MXU operands, f32 accumulation/LayerNorm, gate nonlinearities in gate_dtype).
    NOTE: validates the kernel against an identical-numerics JAX path; bit-parity with f32
    PyTorch would need f32 weights + precision=HIGHEST matmuls."""
    wlin_T, wih_p, bias_p, small = params
    L, H, _ = wih_p.shape
    blin, gamma, beta, wfc = small[0:1, :], small[1:2, :], small[2:3, :], small[3:4, :]
    bfc = small[4, 0]
    h = jnp.dot(x.astype(jnp.bfloat16), wlin_T, preferred_element_type=jnp.float32) + blin
    for l in range(L):
        z = jnp.dot(h.astype(jnp.bfloat16), wih_p[l],
                    preferred_element_type=jnp.float32) + bias_p[l]
        zg = z.astype(gate_dtype)
        i_g = jax.nn.sigmoid(zg[:, 0:H])
        g_g = jnp.tanh(zg[:, H:2 * H])
        o_g = jax.nn.sigmoid(zg[:, 2 * H:3 * H])
        h = (o_g * jnp.tanh(i_g * g_g)).astype(jnp.float32)
    mean = jnp.mean(h, axis=-1, keepdims=True)
    var = jnp.maximum(jnp.mean(h * h, axis=-1, keepdims=True) - mean * mean, 0.0)
    hn = (h - mean) * jax.lax.rsqrt(var + 1e-5) * gamma + beta
    hn = jnp.maximum(hn, 0.0)
    return jnp.sum(hn * wfc, axis=-1, keepdims=True) + bfc


if __name__ == "__main__":
    batch = 8
    input_size = 16
    hidden_size = 32
    num_layers = 2

    key = jax.random.PRNGKey(0)
    kx, kp = jax.random.split(key)
    x = jax.random.normal(kx, (batch, input_size), jnp.float32)
    params = init_params(kp, input_size, hidden_size, num_layers)

    gate_dtype = _select_gate_dtype()
    fwd = jax.jit(functools.partial(lstm_model_forward, tile_batch=4096, gate_dtype=gate_dtype))
    out = jax.block_until_ready(fwd(x, params))

    ref = reference_forward(x, params, gate_dtype=gate_dtype)
    assert out.shape == (batch, 1)
    # Matmul numerics match exactly (bf16 operands, f32 acc in both paths).  With bf16 gate
    # nonlinearities (v6e/v7x) the Mosaic EUP and XLA expansions can differ by ~1 ulp, amplified
    # through LayerNorm -> wider tolerance on that path; f32-gate path stays tight.
    tol = 2e-3 if gate_dtype == jnp.float32 else 3e-2
    assert jnp.allclose(out, ref, atol=tol, rtol=tol), "mismatch vs reference"
    print("KERNEL_OK")
</pallas_src>

<mosaic_0001>
module attributes {stable_mosaic.version = 11 : i64} {
  func.func @lstm_model_kernel(%arg0: i32, %arg1: memref<8x16xf32, #tpu.memory_space<vmem>>, %arg2: memref<16x32xbf16, #tpu.memory_space<vmem>>, %arg3: memref<2x32x96xbf16, #tpu.memory_space<vmem>>, %arg4: memref<2x1x96xf32, #tpu.memory_space<vmem>>, %arg5: memref<8x32xf32, #tpu.memory_space<vmem>>, %arg6: memref<8x1xf32, #tpu.memory_space<vmem>>) attributes {dimension_semantics = [#tpu.dimension_semantics<parallel>], iteration_bounds = array<i64: 1>, scalar_prefetch = 0 : i64, scratch_operands = 0 : i64, tpu.core_type = #tpu.core_type<tc>, window_params = [{transform_indices = @transform_0, window_bounds = array<i64: 8, 16>}, {pipeline_mode = #tpu.pipeline_mode<synchronous>, transform_indices = @transform_1, window_bounds = array<i64: 16, 32>}, {pipeline_mode = #tpu.pipeline_mode<synchronous>, transform_indices = @transform_2, window_bounds = array<i64: 2, 32, 96>}, {pipeline_mode = #tpu.pipeline_mode<synchronous>, transform_indices = @transform_3, window_bounds = array<i64: 2, 1, 96>}, {pipeline_mode = #tpu.pipeline_mode<synchronous>, transform_indices = @transform_4, window_bounds = array<i64: 8, 32>}, {transform_indices = @transform_5, window_bounds = array<i64: 8, 1>}]} {
    %c0 = arith.constant 0 : index
    %c0_0 = arith.constant 0 : index
    %0 = vector.load %arg1[%c0, %c0_0] : memref<8x16xf32, #tpu.memory_space<vmem>>, vector<8x16xf32>
    %1 = arith.truncf %0 : vector<8x16xf32> to vector<8x16xbf16>
    %c0_1 = arith.constant 0 : index
    %c0_2 = arith.constant 0 : index
    %2 = vector.load %arg2[%c0_1, %c0_2] : memref<16x32xbf16, #tpu.memory_space<vmem>>, vector<16x32xbf16>
    %cst = arith.constant dense<0.000000e+00> : vector<8x32xf32>
    %3 = tpu.matmul %1, %2, %cst {dimension_numbers = #tpu.dot_dimension_numbers<[1], [0], [0], [1], [0, 0, 1, 1], [], []>} : vector<8x16xbf16>, vector<16x32xbf16>, vector<8x32xf32> -> vector<8x32xf32>
    %c0_3 = arith.constant 0 : index
    %c0_4 = arith.constant 0 : index
    %4 = vector.load %arg5[%c0_3, %c0_4] : memref<8x32xf32, #tpu.memory_space<vmem>>, vector<1x32xf32>
    %5 = vector.broadcast %4 : vector<1x32xf32> to vector<8x32xf32>
    %6 = arith.addf %3, %5 : vector<8x32xf32>
    %7 = arith.truncf %6 : vector<8x32xf32> to vector<8x32xbf16>
    %c0_5 = arith.constant 0 : index
    %c0_6 = arith.constant 0 : index
    %c0_7 = arith.constant 0 : index
    %8 = vector.load %arg3[%c0_5, %c0_6, %c0_7] : memref<2x32x96xbf16, #tpu.memory_space<vmem>>, vector<1x32x96xbf16>
    %9 = vector.shape_cast %8 : vector<1x32x96xbf16> to vector<32x96xbf16>
    %cst_8 = arith.constant dense<0.000000e+00> : vector<8x96xf32>
    %10 = tpu.matmul %7, %9, %cst_8 {dimension_numbers = #tpu.dot_dimension_numbers<[1], [0], [0], [1], [0, 0, 1, 1], [], []>} : vector<8x32xbf16>, vector<32x96xbf16>, vector<8x96xf32> -> vector<8x96xf32>
    %c0_9 = arith.constant 0 : index
    %c0_10 = arith.constant 0 : index
    %c0_11 = arith.constant 0 : index
    %11 = vector.load %arg4[%c0_9, %c0_10, %c0_11] : memref<2x1x96xf32, #tpu.memory_space<vmem>>, vector<1x1x96xf32>
    %12 = vector.shape_cast %11 : vector<1x1x96xf32> to vector<1x96xf32>
    %13 = vector.broadcast %12 : vector<1x96xf32> to vector<8x96xf32>
    %14 = arith.addf %10, %13 : vector<8x96xf32>
    %15 = vector.extract_strided_slice %14 {offsets = [0, 0], sizes = [8, 32], strides = [1, 1]} : vector<8x96xf32> to vector<8x32xf32>
    %16 = arith.negf %15 : vector<8x32xf32>
    %17 = math.exp %16 : vector<8x32xf32>
    %cst_12 = arith.constant 1.000000e+00 : f32
    %18 = vector.broadcast %cst_12 : f32 to vector<8x32xf32>
    %19 = arith.addf %18, %17 : vector<8x32xf32>
    %20 = arith.divf %18, %19 : vector<8x32xf32>
    %21 = vector.extract_strided_slice %14 {offsets = [0, 32], sizes = [8, 32], strides = [1, 1]} : vector<8x96xf32> to vector<8x32xf32>
    %22 = math.tanh %21 : vector<8x32xf32>
    %23 = vector.extract_strided_slice %14 {offsets = [0, 64], sizes = [8, 32], strides = [1, 1]} : vector<8x96xf32> to vector<8x32xf32>
    %24 = arith.negf %23 : vector<8x32xf32>
    %25 = math.exp %24 : vector<8x32xf32>
    %cst_13 = arith.constant 1.000000e+00 : f32
    %26 = vector.broadcast %cst_13 : f32 to vector<8x32xf32>
    %27 = arith.addf %26, %25 : vector<8x32xf32>
    %28 = arith.divf %26, %27 : vector<8x32xf32>
    %29 = arith.mulf %20, %22 : vector<8x32xf32>
    %30 = math.tanh %29 : vector<8x32xf32>
    %31 = arith.mulf %28, %30 : vector<8x32xf32>
    %32 = arith.truncf %31 : vector<8x32xf32> to vector<8x32xbf16>
    %c1 = arith.constant 1 : index
    %c0_14 = arith.constant 0 : index
    %c0_15 = arith.constant 0 : index
    %33 = vector.load %arg3[%c1, %c0_14, %c0_15] : memref<2x32x96xbf16, #tpu.memory_space<vmem>>, vector<1x32x96xbf16>
    %34 = vector.shape_cast %33 : vector<1x32x96xbf16> to vector<32x96xbf16>
    %cst_16 = arith.constant dense<0.000000e+00> : vector<8x96xf32>
    %35 = tpu.matmul %32, %34, %cst_16 {dimension_numbers = #tpu.dot_dimension_numbers<[1], [0], [0], [1], [0, 0, 1, 1], [], []>} : vector<8x32xbf16>, vector<32x96xbf16>, vector<8x96xf32> -> vector<8x96xf32>
    %c1_17 = arith.constant 1 : index
    %c0_18 = arith.constant 0 : index
    %c0_19 = arith.constant 0 : index
    %36 = vector.load %arg4[%c1_17, %c0_18, %c0_19] : memref<2x1x96xf32, #tpu.memory_space<vmem>>, vector<1x1x96xf32>
    %37 = vector.shape_cast %36 : vector<1x1x96xf32> to vector<1x96xf32>
    %38 = vector.broadcast %37 : vector<1x96xf32> to vector<8x96xf32>
    %39 = arith.addf %35, %38 : vector<8x96xf32>
    %40 = vector.extract_strided_slice %39 {offsets = [0, 0], sizes = [8, 32], strides = [1, 1]} : vector<8x96xf32> to vector<8x32xf32>
    %41 = arith.negf %40 : vector<8x32xf32>
    %42 = math.exp %41 : vector<8x32xf32>
    %cst_20 = arith.constant 1.000000e+00 : f32
    %43 = vector.broadcast %cst_20 : f32 to vector<8x32xf32>
    %44 = arith.addf %43, %42 : vector<8x32xf32>
    %45 = arith.divf %43, %44 : vector<8x32xf32>
    %46 = vector.extract_strided_slice %39 {offsets = [0, 32], sizes = [8, 32], strides = [1, 1]} : vector<8x96xf32> to vector<8x32xf32>
    %47 = math.tanh %46 : vector<8x32xf32>
    %48 = vector.extract_strided_slice %39 {offsets = [0, 64], sizes = [8, 32], strides = [1, 1]} : vector<8x96xf32> to vector<8x32xf32>
    %49 = arith.negf %48 : vector<8x32xf32>
    %50 = math.exp %49 : vector<8x32xf32>
    %cst_21 = arith.constant 1.000000e+00 : f32
    %51 = vector.broadcast %cst_21 : f32 to vector<8x32xf32>
    %52 = arith.addf %51, %50 : vector<8x32xf32>
    %53 = arith.divf %51, %52 : vector<8x32xf32>
    %54 = arith.mulf %45, %47 : vector<8x32xf32>
    %55 = math.tanh %54 : vector<8x32xf32>
    %56 = arith.mulf %53, %55 : vector<8x32xf32>
    %cst_22 = arith.constant dense<0.000000e+00> : vector<8xf32>
    %57 = vector.multi_reduction <add>, %56, %cst_22 [1] : vector<8x32xf32> to vector<8xf32>
    %58 = vector.shape_cast %57 : vector<8xf32> to vector<8x1xf32>
    %cst_23 = arith.constant 3.200000e+01 : f32
    %59 = vector.broadcast %cst_23 : f32 to vector<8x1xf32>
    %60 = arith.divf %58, %59 : vector<8x1xf32>
    %61 = arith.mulf %56, %56 : vector<8x32xf32>
    %cst_24 = arith.constant dense<0.000000e+00> : vector<8xf32>
    %62 = vector.multi_reduction <add>, %61, %cst_24 [1] : vector<8x32xf32> to vector<8xf32>
    %63 = vector.shape_cast %62 : vector<8xf32> to vector<8x1xf32>
    %cst_25 = arith.constant 3.200000e+01 : f32
    %64 = vector.broadcast %cst_25 : f32 to vector<8x1xf32>
    %65 = arith.divf %63, %64 : vector<8x1xf32>
    %66 = arith.mulf %60, %60 : vector<8x1xf32>
    %67 = arith.subf %65, %66 : vector<8x1xf32>
    %cst_26 = arith.constant 0.000000e+00 : f32
    %68 = vector.broadcast %cst_26 : f32 to vector<8x1xf32>
    %69 = arith.maximumf %67, %68 : vector<8x1xf32>
    %70 = vector.broadcast %60 : vector<8x1xf32> to vector<8x32xf32>
    %71 = arith.subf %56, %70 : vector<8x32xf32>
    %cst_27 = arith.constant 9.99999974E-6 : f32
    %72 = vector.broadcast %cst_27 : f32 to vector<8x1xf32>
    %73 = arith.addf %69, %72 : vector<8x1xf32>
    %74 = math.rsqrt %73 : vector<8x1xf32>
    %75 = vector.broadcast %74 : vector<8x1xf32> to vector<8x32xf32>
    %76 = arith.mulf %71, %75 : vector<8x32xf32>
    %c1_28 = arith.constant 1 : index
    %c0_29 = arith.constant 0 : index
    %77 = vector.load %arg5[%c1_28, %c0_29] : memref<8x32xf32, #tpu.memory_space<vmem>>, vector<1x32xf32>
    %78 = vector.broadcast %77 : vector<1x32xf32> to vector<8x32xf32>
    %79 = arith.mulf %76, %78 : vector<8x32xf32>
    %c2 = arith.constant 2 : index
    %c0_30 = arith.constant 0 : index
    %80 = vector.load %arg5[%c2, %c0_30] : memref<8x32xf32, #tpu.memory_space<vmem>>, vector<1x32xf32>
    %81 = vector.broadcast %80 : vector<1x32xf32> to vector<8x32xf32>
    %82 = arith.addf %79, %81 : vector<8x32xf32>
    %cst_31 = arith.constant 0.000000e+00 : f32
    %83 = vector.broadcast %cst_31 : f32 to vector<8x32xf32>
    %84 = arith.maximumf %82, %83 : vector<8x32xf32>
    %c3 = arith.constant 3 : index
    %c0_32 = arith.constant 0 : index
    %85 = vector.load %arg5[%c3, %c0_32] : memref<8x32xf32, #tpu.memory_space<vmem>>, vector<1x32xf32>
    %86 = vector.broadcast %85 : vector<1x32xf32> to vector<8x32xf32>
    %87 = arith.mulf %84, %86 : vector<8x32xf32>
    %cst_33 = arith.constant dense<0.000000e+00> : vector<8xf32>
    %88 = vector.multi_reduction <add>, %87, %cst_33 [1] : vector<8x32xf32> to vector<8xf32>
    %89 = vector.shape_cast %88 : vector<8xf32> to vector<8x1xf32>
    %c4 = arith.constant 4 : index
    %c0_34 = arith.constant 0 : index
    %90 = vector.load %arg5[%c4, %c0_34] : memref<8x32xf32, #tpu.memory_space<vmem>>, vector<1x1xf32>
    %91 = vector.broadcast %90 : vector<1x1xf32> to vector<8x1xf32>
    %92 = arith.addf %89, %91 : vector<8x1xf32>
    %c0_35 = arith.constant 0 : index
    %c0_36 = arith.constant 0 : index
    %93 = vector.load %arg6[%c0_35, %c0_36] : memref<8x1xf32, #tpu.memory_space<vmem>>, vector<8x1xf32>
    tpu.vector_store %arg6[%c0_35, %c0_36], %92 {strides = array<i32>} : memref<8x1xf32, #tpu.memory_space<vmem>>, vector<8x1xf32>,
    return
  }
  func.func @transform_0(%arg0: i32) -> (i32, i32) {
    %c0_i32 = arith.constant 0 : i32
    %c0_i32_0 = arith.constant 0 : i32
    return %arg0, %c0_i32 : i32, i32
  }
  func.func @transform_1(%arg0: i32) -> (i32, i32) {
    %c0_i32 = arith.constant 0 : i32
    %c0_i32_0 = arith.constant 0 : i32
    %c0_i32_1 = arith.constant 0 : i32
    return %c0_i32, %c0_i32_0 : i32, i32
  }
  func.func @transform_2(%arg0: i32) -> (i32, i32, i32) {
    %c0_i32 = arith.constant 0 : i32
    %c0_i32_0 = arith.constant 0 : i32
    %c0_i32_1 = arith.constant 0 : i32
    %c0_i32_2 = arith.constant 0 : i32
    return %c0_i32, %c0_i32_0, %c0_i32_1 : i32, i32, i32
  }
  func.func @transform_3(%arg0: i32) -> (i32, i32, i32) {
    %c0_i32 = arith.constant 0 : i32
    %c0_i32_0 = arith.constant 0 : i32
    %c0_i32_1 = arith.constant 0 : i32
    %c0_i32_2 = arith.constant 0 : i32
    return %c0_i32, %c0_i32_0, %c0_i32_1 : i32, i32, i32
  }
  func.func @transform_4(%arg0: i32) -> (i32, i32) {
    %c0_i32 = arith.constant 0 : i32
    %c0_i32_0 = arith.constant 0 : i32
    %c0_i32_1 = arith.constant 0 : i32
    return %c0_i32, %c0_i32_0 : i32, i32
  }
  func.func @transform_5(%arg0: i32) -> (i32, i32) {
    %c0_i32 = arith.constant 0 : i32
    %c0_i32_0 = arith.constant 0 : i32
    return %arg0, %c0_i32 : i32, i32
  }
}

</mosaic_0001>

<llo_original>
// kernel: lstm_model_forward.1
$region0: #{lstm_model_forward.1}
  #allocation0 [shape = 'u32[]', space=smem, size = 0x4, offset = 0x4, fixed_abs, tag = 'smem constant byte address 0x4 - core index']
  #allocation1 [shape = 'u32[72,128]{1,0:T(1,128)}', space=vmem, size = 0x9000, scoped, tag = 'internal scratch']
  %s0 = inlined_call_operand.hbm [shape: f32[8,16], index: 0, kind: input, shape index: {}]
  %s1 = inlined_call_operand.hbm [shape: bf16[16,32], index: 1, kind: input, shape index: {}]
  %s2 = inlined_call_operand.hbm [shape: bf16[2,32,96], index: 2, kind: input, shape index: {}]
  %s3 = inlined_call_operand.vmem [shape: f32[2,1,96], index: 3, kind: input, shape index: {}]
  %s4 = inlined_call_operand.hbm [shape: f32[8,32], index: 4, kind: input, shape index: {}]
  %s5 = inlined_call_operand.vmem [shape: f32[8,1], index: 5, kind: output, shape index: {}]
  %s6 = sld [smem:[#allocation0]]
  $region46: #{lstm_model_forward.1} parent=0
    _
  %s8 = ssub.s32 1, %s6
  %s9 = scalar_select 0, %s8, %s6
  $region1: #{lstm_model_forward.1} parent=0
    #allocation2 [shape = 'u8[4096]{0}', space=vmem, size = 0x1000, scoped, tag = 'input window, operand 0, single buffered']
    #allocation3 [shape = 's32[1]{0}', space=sflag, size = 0x4, scoped, tag = 'scoped memory for lstm_model_forward.1']
    #allocation4 [shape = 'u8[4096]{0}', space=vmem, size = 0x1000, scoped, tag = 'input window, operand 1, single buffered']
    #allocation5 [shape = 's32[1]{0}', space=sflag, size = 0x4, scoped, tag = 'scoped memory for lstm_model_forward.1']
    #allocation6 [shape = 'u8[16384]{0}', space=vmem, size = 0x4000, scoped, tag = 'input window, operand 2, single buffered']
    #allocation7 [shape = 'u8[4096]{0}', space=vmem, size = 0x1000, scoped, tag = 'input window, operand 4, single buffered']
    #allocation8 [shape = 's32[1]{0}', space=sflag, size = 0x4, scoped, tag = 'scoped memory for lstm_model_forward.1']
    %10 = vsyncpa [#allocation3], 0
    %11 = vsyncpa [#allocation5], 0
    %12 = vsyncpa [#allocation8], 0
    // Predicated region
    $region2: #{lstm_model_forward.1} parent=1 // pred_check
      _
    $region3: #{lstm_model_forward.1} parent=1 // pred_check_branch
      %14 = sbr.rel (0) target = $region5
    $region4: #{lstm_model_forward.1} parent=1 // pred_region
      %16 = vsyncadd [#allocation3], 0
      %s18 = sshll.u32 %s0, 4
      %s19 = int_to_ptr.hbm [resolvable:$true] %s18
      %s20 = sshll.u32 [#allocation2], 4
      %s21 = int_to_ptr.vmem [resolvable:$true] %s20
      %23 = dma.hbm_to_vmem [thread:$0]  %s19, 128, %s21, [#allocation3]
    $region5: #{lstm_model_forward.1} parent=1 // pred_fallthru
      _
    // Predicated region
    $region6: #{lstm_model_forward.1} parent=1 // pred_check
      _
    $region7: #{lstm_model_forward.1} parent=1 // pred_check_branch
      %25 = sbr.rel (0) target = $region9
    $region8: #{lstm_model_forward.1} parent=1 // pred_region
      %27 = vsyncadd [#allocation5], 0
      %s28 = sshll.u32 %s1, 4
      %s29 = int_to_ptr.hbm [resolvable:$true] %s28
      %s30 = sshll.u32 [#allocation4], 4
      %s31 = int_to_ptr.vmem [resolvable:$true] %s30
      %36 = dma.hbm_to_vmem [thread:$0]  %s29, 128, %s31, [#allocation5], 64, 64, 4
    $region9: #{lstm_model_forward.1} parent=1 // pred_fallthru
      _
    // Predicated region
    $region10: #{lstm_model_forward.1} parent=1 // pred_check
      _
    $region11: #{lstm_model_forward.1} parent=1 // pred_check_branch
      %38 = sbr.rel (0) target = $region13
    $region12: #{lstm_model_forward.1} parent=1 // pred_region
      %40 = vsyncadd [#allocation5], 0
      %s41 = sshll.u32 %s2, 4
      %s42 = int_to_ptr.hbm [resolvable:$true] %s41
      %s43 = sshll.u32 [#allocation6], 4
      %s44 = int_to_ptr.vmem [resolvable:$true] %s43
      %49 = dma.hbm_to_vmem [thread:$0]  %s42, 512, %s44, [#allocation5], 64, 64, 4
    $region13: #{lstm_model_forward.1} parent=1 // pred_fallthru
      _
    // Predicated region
    $region14: #{lstm_model_forward.1} parent=1 // pred_check
      _
    $region15: #{lstm_model_forward.1} parent=1 // pred_check_branch
      %51 = sbr.rel (0) target = $region17
    $region16: #{lstm_model_forward.1} parent=1 // pred_region
      _
    $region17: #{lstm_model_forward.1} parent=1 // pred_fallthru
      _
    // Predicated region
    $region18: #{lstm_model_forward.1} parent=1 // pred_check
      _
    $region19: #{lstm_model_forward.1} parent=1 // pred_check_branch
      %53 = sbr.rel (0) target = $region21
    $region20: #{lstm_model_forward.1} parent=1 // pred_region
      %55 = vsyncadd [#allocation8], 0
      %s57 = sshll.u32 %s4, 4
      %s58 = int_to_ptr.hbm [resolvable:$true] %s57
      %s59 = sshll.u32 [#allocation7], 4
      %s60 = int_to_ptr.vmem [resolvable:$true] %s59
      %62 = dma.hbm_to_vmem [thread:$0]  %s58, 128, %s60, [#allocation8]
    $region21: #{lstm_model_forward.1} parent=1 // pred_fallthru
      _
    // Predicated region
    $region22: #{lstm_model_forward.1} parent=1 // pred_check
      _
    $region23: #{lstm_model_forward.1} parent=1 // pred_check_branch
      %64 = sbr.rel (0) target = $region25
    $region24: #{lstm_model_forward.1} parent=1 // pred_region
      %66 = dma.done [#allocation3], 128
    $region25: #{lstm_model_forward.1} parent=1 // pred_fallthru
      _
    // Predicated region
    $region26: #{lstm_model_forward.1} parent=1 // pred_check
      _
    $region27: #{lstm_model_forward.1} parent=1 // pred_check_branch
      %68 = sbr.rel (0) target = $region29
    $region28: #{lstm_model_forward.1} parent=1 // pred_region
      %70 = dma.done [#allocation5], 128
    $region29: #{lstm_model_forward.1} parent=1 // pred_fallthru
      _
    // Predicated region
    $region30: #{lstm_model_forward.1} parent=1 // pred_check
      _
    $region31: #{lstm_model_forward.1} parent=1 // pred_check_branch
      %72 = sbr.rel (0) target = $region33
    $region32: #{lstm_model_forward.1} parent=1 // pred_region
      %74 = dma.done [#allocation5], 512
    $region33: #{lstm_model_forward.1} parent=1 // pred_fallthru
      _
    // Predicated region
    $region34: #{lstm_model_forward.1} parent=1 // pred_check
      _
    $region35: #{lstm_model_forward.1} parent=1 // pred_check_branch
      %76 = sbr.rel (0) target = $region37
    $region36: #{lstm_model_forward.1} parent=1 // pred_region
      %78 = dma.done [#allocation8], 128
    $region37: #{lstm_model_forward.1} parent=1 // pred_fallthru
      _
    %v80 = vld [vmem:[#allocation2] sm:$0xff]
    %v81 = vpack.c.bf16 %v80, %v80
    %v82 = vld [vmem:[#allocation4] sm:$0xf]
    %v83 = vld [vmem:[#allocation4 + $0x4] sm:$0xf]
    %v84 = vld [vmem:[#allocation7] sm:$0x1]
    %v85 = vperm.slane %v84, 0
    %v88 = vunpack.c.l.b16 %v82
    %v89 = vunpack.c.l.b16 %v83
    %v90 = vpack.c.b16 %v89, %v88
    %vm92 = vcmask 130048
    %v94 = vsel %vm92, %v81, 0
    %96 = vmatpush.bf16.msra.mxu0 0
    %97 = vmatpush.bf16.msra.mxu0 0
    %98 = vmatpush.bf16.msra.mxu0 0
    %99 = vmatpush.bf16.msra.mxu0 0
    %100 = vmatpush.bf16.msra.mxu0 0
    %101 = vmatpush.bf16.msra.mxu0 0
    %102 = vmatpush.bf16.msra.mxu0 0
    %103 = vmatpush.bf16.msra.mxu0 %v90
    %104 = vmatmul.bf16.gmra.mxu0 %v94
    %v105 = vpop.f32.mrf.mxu0
    %v106 = vadd.f32 %v85, %v105
    %v107 = vpop.f32.mrf.mxu0
    %108 = vdwg.mxu0
    %v109 = vpack.c.bf16 %v106, %v106
    %v110 = vld [vmem:[#allocation6] sm:$0xf]
    %v111 = vld [vmem:[#allocation6 + $0x4] sm:$0xf]
    %v112 = vld [vmem:[#allocation6 + $0x8] sm:$0xf]
    %v113 = vld [vmem:[#allocation6 + $0xc] sm:$0xf]
    %v114 = vld [vmem:[%s3] sm:$0x1]
    %v116 = vperm.slane %v114, 0
    %v122 = vunpack.c.l.b16 %v110
    %v123 = vunpack.c.l.b16 %v111
    %v124 = vunpack.c.l.b16 %v112
    %v125 = vunpack.c.l.b16 %v113
    %v126 = vpack.c.b16 %v123, %v122
    %v127 = vpack.c.b16 %v125, %v124
    %vm130 = vcmask 261120
    %v132 = vsel %vm130, %v109, 0
    %134 = vmatpush.bf16.msra.mxu0 0
    %135 = vmatpush.bf16.msra.mxu0 0
    %136 = vmatpush.bf16.msra.mxu0 0
    %137 = vmatpush.bf16.msra.mxu0 0
    %138 = vmatpush.bf16.msra.mxu0 0
    %139 = vmatpush.bf16.msra.mxu0 0
    %140 = vmatpush.bf16.msra.mxu0 %v127
    %141 = vmatpush.bf16.msra.mxu0 %v126
    %142 = vmatmul.bf16.gmra.mxu0 %v132
    %v143 = vpop.f32.mrf.mxu0
    %v144 = vadd.f32 %v116, %v143
    %v145 = vpop.f32.mrf.mxu0
    %146 = vdwg.mxu0
    %v147 = vxor.u32 %v144, 2147483648
    %v148 = vmul.f32 %v147, 1.442695
    %v149 = vpow.pop %v148
    %v150 = vadd.f32 %v149, 1.0
    %v151 = vrcp.pop %v150
    %v152 = vmul.f32 %v150, %v151
    %v153 = vsub.f32 1.0, %v152
    %v154 = vmul.f32 %v151, %v153
    %v155 = vadd.f32 %v151, %v154
    %vm156 = vweird.f32 %v150
    %vm157 = vweird.f32 %v151
    %vm158 = vmor %vm156, %vm157
    %v159 = vsel %vm158, %v151, %v155
    %v160 = vand.u32 2147483647, %v150
    %vm161 = vcmp.eq.f32.partialorder %v160, 8.507059e+37
    %v162 = vand.u32 %v150, 2147483648
    %v163 = vor.u32 1.1754944e-38, %v162
    %v164 = vsel %vm161, %v163, %v159
    %v165 = vmul.f32 1.0, %v164
    %v166 = vtanh.pop %v144
    %168 = vrot.lane.b32.xlu0 %v166, 96
    %v169 = vpop.permute.xlu0 %168
    %v171 = vmul.f32 %v165, %v169
    %v172 = vtanh.pop %v171
    %174 = vrot.lane.b32.xlu0 %v172, 64
    %v175 = vpop.permute.xlu0 %174
    %v177 = vmul.f32 %v165, %v175
    %v178 = vpack.c.bf16 %v177, %v177
    %s179 = scalar_lea.vmem [#allocation6], 16
    %v180 = vld [vmem:[%s179] sm:$0xf]
    %v181 = vld [vmem:[%s179 + $0x4] sm:$0xf]
    %v182 = vld [vmem:[%s179 + $0x8] sm:$0xf]
    %v183 = vld [vmem:[%s179 + $0xc] sm:$0xf]
    %s184 = scalar_lea.vmem %s3, 1
    %v185 = vld [vmem:[%s184] sm:$0x1]
    %v187 = vperm.slane %v185, 0
    %190 = vrot.lane.b32.xlu0 %v178, 64
    %v191 = vpop.permute.xlu0 %190
    %v196 = vunpack.c.l.b16 %v180
    %v197 = vunpack.c.l.b16 %v181
    %v198 = vunpack.c.l.b16 %v182
    %v199 = vunpack.c.l.b16 %v183
    %v200 = vpack.c.b16 %v197, %v196
    %v201 = vpack.c.b16 %v199, %v198
    %v205 = vsel %vm130, %v191, 0
    %207 = vmatpush.bf16.msra.mxu0 0
    %208 = vmatpush.bf16.msra.mxu0 0
    %209 = vmatpush.bf16.msra.mxu0 0
    %210 = vmatpush.bf16.msra.mxu0 0
    %211 = vmatpush.bf16.msra.mxu0 0
    %212 = vmatpush.bf16.msra.mxu0 0
    %213 = vmatpush.bf16.msra.mxu0 %v201
    %214 = vmatpush.bf16.msra.mxu0 %v200
    %215 = vmatmul.bf16.gmra.mxu0 %v205
    %v216 = vpop.f32.mrf.mxu0
    %v217 = vadd.f32 %v187, %v216
    %v218 = vpop.f32.mrf.mxu0
    %219 = vdwg.mxu0
    %v220 = vxor.u32 %v217, 2147483648
    %v221 = vmul.f32 %v220, 1.442695
    %v222 = vpow.pop %v221
    %v223 = vadd.f32 %v222, 1.0
    %v224 = vrcp.pop %v223
    %v225 = vmul.f32 %v223, %v224
    %v226 = vsub.f32 1.0, %v225
    %v227 = vmul.f32 %v224, %v226
    %v228 = vadd.f32 %v224, %v227
    %vm229 = vweird.f32 %v223
    %vm230 = vweird.f32 %v224
    %vm231 = vmor %vm229, %vm230
    %v232 = vsel %vm231, %v224, %v228
    %v233 = vand.u32 2147483647, %v223
    %vm234 = vcmp.eq.f32.partialorder %v233, 8.507059e+37
    %v235 = vand.u32 %v223, 2147483648
    %v236 = vor.u32 1.1754944e-38, %v235
    %v237 = vsel %vm234, %v236, %v232
    %v238 = vmul.f32 1.0, %v237
    %v239 = vtanh.pop %v217
    %241 = vrot.lane.b32.xlu0 %v239, 96
    %v242 = vpop.permute.xlu0 %241
    %v244 = vmul.f32 %v238, %v242
    %v245 = vtanh.pop %v244
    %247 = vrot.lane.b32.xlu0 %v245, 64
    %v248 = vpop.permute.xlu0 %247
    %v250 = vmul.f32 %v238, %v248
    %252 = vrot.lane.b32.xlu0 %v250, 64
    %v253 = vpop.permute.xlu0 %252
    %v255 = vsel %vm130, %v253, 0.0
    %256 = vadd.xlane.f32.xlu0 %v255
    %v257 = vpop.xlane.xlu0 %256
    %v258 = vrcp.pop 32.0
    %v259 = vmul.f32 32.0, %v258
    %v260 = vsub.f32 1.0, %v259
    %v261 = vmul.f32 %v258, %v260
    %v262 = vadd.f32 %v258, %v261
    %vm263 = vweird.f32 %v258
    %v264 = vsel %vm263, %v258, %v262
    %v265 = vmul.f32 %v257, %v264
    %v266 = vmul.f32 %v250, %v250
    %268 = vrot.lane.b32.xlu0 %v266, 64
    %v269 = vpop.permute.xlu0 %268
    %v271 = vsel %vm130, %v269, 0.0
    %272 = vadd.xlane.f32.xlu0 %v271
    %v273 = vpop.xlane.xlu0 %272
    %v274 = vmul.f32 %v273, %v264
    %v275 = vmul.f32 %v265, %v265
    %v276 = vsub.f32 %v274, %v275
    %v277 = vmax.f32 %v276, 0.0
    %v278 = vsub.f32 %v250, %v265
    %v279 = vadd.f32 %v277, 1e-05
    %v280 = vrsqrt.pop %v279
    %v281 = vmul.f32 %v280, %v279
    %v282 = vmul.f32 %v281, %v280
    %v283 = vmul.f32 0.5, %v282
    %v284 = vsub.f32 1.5, %v283
    %v285 = vmul.f32 %v280, %v284
    %vm286 = vweird.f32 %v279
    %vm287 = vweird.f32 %v280
    %vm288 = vmor %vm286, %vm287
    %v289 = vsel %vm288, %v280, %v285
    %v290 = vmul.f32 %v278, %v289
    %v291 = vld [vmem:[#allocation7 + $0x1] sm:$0x1]
    %v292 = vperm.slane %v291, 0
    %294 = vrot.lane.b32.xlu0 %v292, 64
    %v295 = vpop.permute.xlu0 %294
    %v297 = vmul.f32 %v290, %v295
    %v298 = vld [vmem:[#allocation7 + $0x2] sm:$0x1]
    %v299 = vperm.slane %v298, 0
    %301 = vrot.lane.b32.xlu0 %v299, 64
    %v302 = vpop.permute.xlu0 %301
    %v304 = vadd.f32 %v297, %v302
    %v305 = vmax.f32 %v304, 0.0
    %v306 = vld [vmem:[#allocation7 + $0x3] sm:$0x1]
    %v307 = vperm.slane %v306, 0
    %309 = vrot.lane.b32.xlu0 %v307, 64
    %v310 = vpop.permute.xlu0 %309
    %v312 = vmul.f32 %v305, %v310
    %314 = vrot.lane.b32.xlu0 %v312, 64
    %v315 = vpop.permute.xlu0 %314
    %v317 = vsel %vm130, %v315, 0.0
    %318 = vadd.xlane.f32.xlu0 %v317
    %v319 = vpop.xlane.xlu0 %318
    %v320 = vld [vmem:[#allocation7 + $0x4] sm:$0x1]
    %v321 = vperm.slane %v320, 0
    %v322 = vadd.f32 %v319, %v321
    %vm323 = vcmask 7168
    %324 = vst.msk [vmem:[%s5] sm:$0xff] %vm323, %v322
    // Predicated region
    $region38: #{lstm_model_forward.1} parent=1 // pred_check
      _
    $region39: #{lstm_model_forward.1} parent=1 // pred_check_branch
      %326 = sbr.rel (0) target = $region41
    $region40: #{lstm_model_forward.1} parent=1 // pred_region
      _
    $region41: #{lstm_model_forward.1} parent=1 // pred_fallthru
      _
    // Predicated region
    $region42: #{lstm_model_forward.1} parent=1 // pred_check
      _
    $region43: #{lstm_model_forward.1} parent=1 // pred_check_branch
      %328 = sbr.rel (0) target = $region45
    $region44: #{lstm_model_forward.1} parent=1 // pred_region
      _
    $region45: #{lstm_model_forward.1} parent=1 // pred_fallthru
      _
    %329 = vsyncpa [#allocation3], 1
    %330 = vsyncpa [#allocation5], 1
    %331 = vsyncpa [#allocation8], 1

</llo_original>
